<compile_context>
chip_gen: v5e
topology: v5e:2x2
jax: 0.10.0
libtpu: 0.0.40
codegen_flags: <defaults>
</compile_context>

<pallas_src>
import functools

import jax
import jax.numpy as jnp
from jax.experimental import pallas as pl
from jax.experimental.pallas import tpu as pltpu


def _round_up(v: int, m: int) -> int:
    return (v + m - 1) // m * m


def _xwt(x, w):
    # x: (TM, TK), w: (C_pad, TK)  ->  (TM, C_pad), f32 accumulation on the MXU.
    return jax.lax.dot_general(
        x, w,
        dimension_numbers=(((1,), (1,)), ((), ())),
        preferred_element_type=jnp.float32)


def linear_kernel_single_k(x_ref, w_ref, b_ref, o_ref):
    # Whole reduction dim in one tile: no scratch accumulator, no phase gates.
    o_ref[...] = (_xwt(x_ref[...], w_ref[...]) + b_ref[...]).astype(o_ref.dtype)


def linear_kernel_multi_k(x_ref, w_ref, b_ref, o_ref, acc_ref):
    # x_ref: (TM, TK)   w_ref: (C_pad, TK)   b_ref: (1, C_pad)
    # o_ref: (TM, C_pad)  acc_ref: (TM, C_pad) f32 scratch
    k = pl.program_id(1)

    @pl.when(k == 0)
    def _():
        acc_ref[...] = jnp.zeros_like(acc_ref)

    acc_ref[...] += _xwt(x_ref[...], w_ref[...])

    @pl.when(k == pl.num_programs(1) - 1)
    def _():
        o_ref[...] = (acc_ref[...] + b_ref[...]).astype(o_ref.dtype)


def softmax_classifier_forward(x, weight, bias, *, tm=256, tk=512):
    """Equivalent of nn.Linear(input_dim, num_classes)(x) (raw logits).

    x:      (B, input_dim) float32
    weight: (num_classes, input_dim) float32   (native PyTorch layout, NOT transposed)
    bias:   (num_classes,) float32
    returns (B, num_classes) float32
    """
    B, D = x.shape
    C = weight.shape[0]

    # --- pad to lane/sublane friendly sizes -------------------------------
    c_pad = _round_up(C, 128)                  # lane-dense output stores
    tm = tm if B >= tm else _round_up(B, 8)    # batch tile (multiple of 8 sublanes)
    b_pad = _round_up(B, tm)
    tk = tk if D >= tk else _round_up(D, 128)  # reduction tile (multiple of 128 lanes)
    d_pad = _round_up(D, tk)

    x_p = jnp.pad(x, ((0, b_pad - B), (0, d_pad - D)))
    w_p = jnp.pad(weight, ((0, c_pad - C), (0, d_pad - D)))
    b_p = jnp.pad(bias, (0, c_pad - C)).reshape(1, c_pad)

    n_bt = b_pad // tm
    n_kt = d_pad // tk

    # --- explicit VMEM budget (v7x physical ceiling is 64 MiB) ------------
    tile_bytes = 4 * (2 * (tm * tk + c_pad * tk + tm * c_pad + c_pad) + tm * c_pad)
    vmem_limit = min(max(2 * tile_bytes, 32 * 1024 * 1024), 48 * 1024 * 1024)

    flops = 2 * b_pad * d_pad * c_pad
    bytes_accessed = 4 * (b_pad * d_pad + c_pad * d_pad + c_pad + b_pad * c_pad)
    cost = pl.CostEstimate(flops=flops, transcendentals=0,
                           bytes_accessed=bytes_accessed)

    if n_kt == 1:
        # Fast path: single reduction tile, no scratch, 1-D grid over batch.
        out_pad = pl.pallas_call(
            linear_kernel_single_k,
            out_shape=jax.ShapeDtypeStruct((b_pad, c_pad), x.dtype),
            grid=(n_bt,),
            in_specs=[
                pl.BlockSpec((tm, tk), lambda i: (i, 0)),       # x tile
                pl.BlockSpec((c_pad, tk), lambda i: (0, 0)),    # weight (resident over i)
                pl.BlockSpec((1, c_pad), lambda i: (0, 0)),     # bias (resident)
            ],
            out_specs=pl.BlockSpec((tm, c_pad), lambda i: (i, 0)),
            compiler_params=pltpu.CompilerParams(
                dimension_semantics=("parallel",),
                vmem_limit_bytes=vmem_limit),
            cost_estimate=cost,
        )(x_p, w_p, b_p)
    else:
        # General path: reduction axis last ("arbitrary") with f32 accumulator.
        out_pad = pl.pallas_call(
            linear_kernel_multi_k,
            out_shape=jax.ShapeDtypeStruct((b_pad, c_pad), x.dtype),
            grid=(n_bt, n_kt),
            in_specs=[
                pl.BlockSpec((tm, tk), lambda i, k: (i, k)),       # x tile
                pl.BlockSpec((c_pad, tk), lambda i, k: (0, k)),    # weight tile (resident over i)
                pl.BlockSpec((1, c_pad), lambda i, k: (0, 0)),     # bias (resident)
            ],
            out_specs=pl.BlockSpec((tm, c_pad), lambda i, k: (i, 0)),
            scratch_shapes=[pltpu.VMEM((tm, c_pad), jnp.float32)],
            compiler_params=pltpu.CompilerParams(
                dimension_semantics=("parallel", "arbitrary"),
                vmem_limit_bytes=vmem_limit),
            cost_estimate=cost,
        )(x_p, w_p, b_p)

    return out_pad[:B, :C]


if __name__ == "__main__":
    key = jax.random.PRNGKey(0)
    batch, input_dim, num_classes = 8, 32, 16

    kx, kw, kb = jax.random.split(key, 3)
    x = jax.random.normal(kx, (batch, input_dim), dtype=jnp.float32)
    # Mimic nn.Linear's uniform(-1/sqrt(D), 1/sqrt(D)) init, deterministically.
    bound = 1.0 / jnp.sqrt(jnp.float32(input_dim))
    weight = jax.random.uniform(kw, (num_classes, input_dim),
                                minval=-bound, maxval=bound, dtype=jnp.float32)
    bias = jax.random.uniform(kb, (num_classes,),
                              minval=-bound, maxval=bound, dtype=jnp.float32)

    fwd = jax.jit(functools.partial(softmax_classifier_forward))
    out = fwd(x, weight, bias)
    jax.block_until_ready(out)

    # Correctness check against plain-JAX reference (forward returns raw logits,
    # matching the PyTorch module which applies no softmax).
    ref = x @ weight.T + bias
    assert out.shape == (batch, num_classes)
    assert jnp.allclose(out, ref, atol=1e-5, rtol=1e-5)

    # Also exercise the multi-K accumulator path with a larger reduction dim.
    D2, C2, B2 = 1024, 40, 300
    kx2, kw2, kb2 = jax.random.split(jax.random.PRNGKey(1), 3)
    x2 = jax.random.normal(kx2, (B2, D2), dtype=jnp.float32)
    w2 = jax.random.normal(kw2, (C2, D2), dtype=jnp.float32) * 0.02
    b2 = jax.random.normal(kb2, (C2,), dtype=jnp.float32) * 0.02
    out2 = softmax_classifier_forward(x2, w2, b2, tm=128, tk=512)
    jax.block_until_ready(out2)
    ref2 = x2 @ w2.T + b2
    assert out2.shape == (B2, C2)
    assert jnp.allclose(out2, ref2, atol=1e-4, rtol=1e-4)

    print("KERNEL_OK")
</pallas_src>

<mosaic_0001>
module attributes {stable_mosaic.version = 11 : i64} {
  func.func @linear_kernel_single_k(%arg0: i32, %arg1: memref<8x128xf32, #tpu.memory_space<vmem>>, %arg2: memref<128x128xf32, #tpu.memory_space<vmem>>, %arg3: memref<1x128xf32, #tpu.memory_space<vmem>>, %arg4: memref<8x128xf32, #tpu.memory_space<vmem>>) attributes {dimension_semantics = [#tpu.dimension_semantics<parallel>], iteration_bounds = array<i64: 1>, scalar_prefetch = 0 : i64, scratch_operands = 0 : i64, tpu.core_type = #tpu.core_type<tc>, window_params = [{transform_indices = @transform_0, window_bounds = array<i64: 8, 128>}, {pipeline_mode = #tpu.pipeline_mode<synchronous>, transform_indices = @transform_1, window_bounds = array<i64: 128, 128>}, {pipeline_mode = #tpu.pipeline_mode<synchronous>, transform_indices = @transform_2, window_bounds = array<i64: 1, 128>}, {transform_indices = @transform_3, window_bounds = array<i64: 8, 128>}]} {
    %c0 = arith.constant 0 : index
    %c0_0 = arith.constant 0 : index
    %0 = vector.load %arg1[%c0, %c0_0] : memref<8x128xf32, #tpu.memory_space<vmem>>, vector<8x128xf32>
    %c0_1 = arith.constant 0 : index
    %c0_2 = arith.constant 0 : index
    %1 = vector.load %arg2[%c0_1, %c0_2] : memref<128x128xf32, #tpu.memory_space<vmem>>, vector<128x128xf32>
    %cst = arith.constant dense<0.000000e+00> : vector<8x128xf32>
    %2 = tpu.matmul %0, %1, %cst {dimension_numbers = #tpu.dot_dimension_numbers<[1], [1], [0], [0], [0, 0, 1, 0], [], []>} : vector<8x128xf32>, vector<128x128xf32>, vector<8x128xf32> -> vector<8x128xf32>
    %c0_3 = arith.constant 0 : index
    %c0_4 = arith.constant 0 : index
    %3 = vector.load %arg3[%c0_3, %c0_4] : memref<1x128xf32, #tpu.memory_space<vmem>>, vector<1x128xf32>
    %4 = vector.broadcast %3 : vector<1x128xf32> to vector<8x128xf32>
    %5 = arith.addf %2, %4 : vector<8x128xf32>
    %c0_5 = arith.constant 0 : index
    %c0_6 = arith.constant 0 : index
    %6 = vector.load %arg4[%c0_5, %c0_6] : memref<8x128xf32, #tpu.memory_space<vmem>>, vector<8x128xf32>
    tpu.vector_store %arg4[%c0_5, %c0_6], %5 {strides = array<i32>} : memref<8x128xf32, #tpu.memory_space<vmem>>, vector<8x128xf32>,
    return
  }
  func.func @transform_0(%arg0: i32) -> (i32, i32) {
    %c0_i32 = arith.constant 0 : i32
    %c0_i32_0 = arith.constant 0 : i32
    return %arg0, %c0_i32 : i32, i32
  }
  func.func @transform_1(%arg0: i32) -> (i32, i32) {
    %c0_i32 = arith.constant 0 : i32
    %c0_i32_0 = arith.constant 0 : i32
    %c0_i32_1 = arith.constant 0 : i32
    return %c0_i32, %c0_i32_0 : i32, i32
  }
  func.func @transform_2(%arg0: i32) -> (i32, i32) {
    %c0_i32 = arith.constant 0 : i32
    %c0_i32_0 = arith.constant 0 : i32
    %c0_i32_1 = arith.constant 0 : i32
    return %c0_i32, %c0_i32_0 : i32, i32
  }
  func.func @transform_3(%arg0: i32) -> (i32, i32) {
    %c0_i32 = arith.constant 0 : i32
    %c0_i32_0 = arith.constant 0 : i32
    return %arg0, %c0_i32 : i32, i32
  }
}

</mosaic_0001>

<llo_original>
// kernel: softmax_classifier_forward.1
$region0: #{softmax_classifier_forward.1}
  #allocation0 [shape = 'u32[]', space=smem, size = 0x4, offset = 0x4, fixed_abs, tag = 'smem constant byte address 0x4 - core index']
  #allocation1 [shape = 'u32[72,128]{1,0:T(1,128)}', space=vmem, size = 0x9000, scoped, tag = 'internal scratch']
  %s0 = inlined_call_operand.vmem [shape: f32[8,128], index: 0, kind: input, shape index: {}]
  %s1 = inlined_call_operand.vmem [shape: f32[128,128], index: 1, kind: input, shape index: {}]
  %s2 = inlined_call_operand.vmem [shape: f32[1,128], index: 2, kind: input, shape index: {}]
  %s3 = inlined_call_operand.hbm [shape: f32[8,128], index: 3, kind: output, shape index: {}]
  %s4 = sld [smem:[#allocation0]]
  $region22: #{softmax_classifier_forward.1} parent=0
    _
  %s6 = ssub.s32 1, %s4
  %s7 = scalar_select 0, %s6, %s4
  $region1: #{softmax_classifier_forward.1} parent=0
    #allocation2 [shape = 'u8[4096]{0}', space=vmem, size = 0x1000, scoped, tag = 'output window, operand 0, single buffered']
    #allocation3 [shape = 's32[1]{0}', space=sflag, size = 0x4, scoped, tag = 'scoped memory for softmax_classifier_forward.1']
    %8 = vsyncpa [#allocation3], 0
    // Predicated region
    $region2: #{softmax_classifier_forward.1} parent=1 // pred_check
      _
    $region3: #{softmax_classifier_forward.1} parent=1 // pred_check_branch
      %10 = sbr.rel (0) target = $region5
    $region4: #{softmax_classifier_forward.1} parent=1 // pred_region
      _
    $region5: #{softmax_classifier_forward.1} parent=1 // pred_fallthru
      _
    // Predicated region
    $region6: #{softmax_classifier_forward.1} parent=1 // pred_check
      _
    $region7: #{softmax_classifier_forward.1} parent=1 // pred_check_branch
      %12 = sbr.rel (0) target = $region9
    $region8: #{softmax_classifier_forward.1} parent=1 // pred_region
      _
    $region9: #{softmax_classifier_forward.1} parent=1 // pred_fallthru
      _
    // Predicated region
    $region10: #{softmax_classifier_forward.1} parent=1 // pred_check
      _
    $region11: #{softmax_classifier_forward.1} parent=1 // pred_check_branch
      %14 = sbr.rel (0) target = $region13
    $region12: #{softmax_classifier_forward.1} parent=1 // pred_region
      _
    $region13: #{softmax_classifier_forward.1} parent=1 // pred_fallthru
      _
    %v15 = vld [vmem:[%s0] sm:$0xff]
    %v16 = vld [vmem:[%s1] sm:$0xff]
    %v17 = vld [vmem:[%s1 + $0x8] sm:$0xff]
    %v18 = vld [vmem:[%s1 + $0x10] sm:$0xff]
    %v19 = vld [vmem:[%s1 + $0x18] sm:$0xff]
    %v20 = vld [vmem:[%s1 + $0x20] sm:$0xff]
    %v21 = vld [vmem:[%s1 + $0x28] sm:$0xff]
    %v22 = vld [vmem:[%s1 + $0x30] sm:$0xff]
    %v23 = vld [vmem:[%s1 + $0x38] sm:$0xff]
    %v24 = vld [vmem:[%s1 + $0x40] sm:$0xff]
    %v25 = vld [vmem:[%s1 + $0x48] sm:$0xff]
    %v26 = vld [vmem:[%s1 + $0x50] sm:$0xff]
    %v27 = vld [vmem:[%s1 + $0x58] sm:$0xff]
    %v28 = vld [vmem:[%s1 + $0x60] sm:$0xff]
    %v29 = vld [vmem:[%s1 + $0x68] sm:$0xff]
    %v30 = vld [vmem:[%s1 + $0x70] sm:$0xff]
    %v31 = vld [vmem:[%s1 + $0x78] sm:$0xff]
    %v32 = vld [vmem:[%s2] sm:$0x1]
    %v34 = vperm.slane %v32, 0
    %36 = vmatpush.xpose.msra.mxu0 %v31
    %37 = vmatpush.xpose.msra.mxu0 %v30
    %38 = vmatpush.xpose.msra.mxu0 %v29
    %39 = vmatpush.xpose.msra.mxu0 %v28
    %40 = vmatpush.xpose.msra.mxu0 %v27
    %41 = vmatpush.xpose.msra.mxu0 %v26
    %42 = vmatpush.xpose.msra.mxu0 %v25
    %43 = vmatpush.xpose.msra.mxu0 %v24
    %44 = vmatpush.xpose.msra.mxu0 %v23
    %45 = vmatpush.xpose.msra.mxu0 %v22
    %46 = vmatpush.xpose.msra.mxu0 %v21
    %47 = vmatpush.xpose.msra.mxu0 %v20
    %48 = vmatpush.xpose.msra.mxu0 %v19
    %49 = vmatpush.xpose.msra.mxu0 %v18
    %50 = vmatpush.xpose.msra.mxu0 %v17
    %51 = vmatpush.xpose.msra.mxu0 %v16
    %52 = vmatmul.f32.gmra.mxu0 %v15
    %v53 = vpop.f32.mrf.mxu0
    %v54 = vadd.f32 %v34, %v53
    %55 = vdwg.mxu0
    %56 = vst [vmem:[#allocation2] sm:$0xff] %v54
    // Predicated region
    $region14: #{softmax_classifier_forward.1} parent=1 // pred_check
      _
    $region15: #{softmax_classifier_forward.1} parent=1 // pred_check_branch
      %58 = sbr.rel (0) target = $region17
    $region16: #{softmax_classifier_forward.1} parent=1 // pred_region
      %60 = vsyncadd [#allocation3], 0
      %s62 = sshll.u32 [#allocation2], 4
      %s63 = int_to_ptr.vmem [resolvable:$true] %s62
      %s64 = sshll.u32 %s3, 4
      %s65 = int_to_ptr.hbm [resolvable:$true] %s64
      %67 = dma.vmem_to_hbm [thread:$0]  %s63, 128, %s65, [#allocation3]
    $region17: #{softmax_classifier_forward.1} parent=1 // pred_fallthru
      _
    // Predicated region
    $region18: #{softmax_classifier_forward.1} parent=1 // pred_check
      _
    $region19: #{softmax_classifier_forward.1} parent=1 // pred_check_branch
      %69 = sbr.rel (0) target = $region21
    $region20: #{softmax_classifier_forward.1} parent=1 // pred_region
      %71 = dma.done [#allocation3], 128
    $region21: #{softmax_classifier_forward.1} parent=1 // pred_fallthru
      _
    %72 = vsyncpa [#allocation3], 1

</llo_original>
